<compile_context>
chip_gen: v5e
topology: v5e:2x2
jax: 0.10.0
libtpu: 0.0.40
codegen_flags: <defaults>
</compile_context>

<pallas_src>
import functools
import math

import jax
import jax.numpy as jnp
from jax import lax
from jax.experimental import pallas as pl
from jax.experimental.pallas import tpu as pltpu

HIDDEN = 256
HEAD_SIZES = (4, 3, 3, 2)            # category, sentiment, tense, certainty
HEAD_STARTS = (0, 4, 7, 10)
TOTAL_OUT = sum(HEAD_SIZES)          # 12


def _round_up(x, m):
    return ((x + m - 1) // m) * m


def _choose_tile(batch, tile_b):
    """Batch tile: full batch if small (block dims == array dims is always
    legal), else a 128-aligned tile that yields >=2 grid steps (v7x dual-TC)."""
    if batch <= 256:
        return batch
    tb = min(tile_b, _round_up(pl.cdiv(batch, 2), 128))
    return max(128, (tb // 128) * 128)


def _classifier_head_kernel(h_ref, w_ref, b_ref, out_ref, *, approx_gelu):
    # h_ref:   [TB, 256]  CLS hidden states (bf16 preferred)
    # w_ref:   [12, 256]  fused head weights, torch [out, in] layout, bf16
    # b_ref:   [12, 1]    fused bias, f32
    # out_ref: [12, TB]   probabilities, batch on the lane axis (lane-dense store)
    x = h_ref[...]

    if approx_gelu:
        # tanh-form GELU: transcendental work rides the EUP slot.
        g = jax.nn.gelu(x, approximate=True)
    else:
        # exact erf GELU (torch.nn.GELU() default numerics); VALU polynomial.
        xf = x.astype(jnp.float32)
        g = (0.5 * xf * (1.0 + lax.erf(xf * (1.0 / math.sqrt(2.0))))).astype(x.dtype)
    # TODO(synk): nn.Dropout is identity at inference; no kernel-side RNG drop applied.

    # Fused 4-head linear with batch on lanes:
    #   [12, 256] (contract dim 1) x [TB, 256] (contract dim 1) -> [12, TB]
    logits = lax.dot_general(
        w_ref[...], g.astype(w_ref.dtype),
        dimension_numbers=(((1,), (1,)), ((), ())),
        preferred_element_type=jnp.float32) + b_ref[...]          # [12, TB] f32

    # Per-head softmax over the tiny sublane axis; the batch/lane axis stays dense.
    parts = []
    for s, n in zip(HEAD_STARTS, HEAD_SIZES):
        blk = logits[s:s + n, :]                                  # [n, TB]
        m = jnp.max(blk, axis=0, keepdims=True)                   # [1, TB]
        e = jnp.exp(blk - m)                                      # [n, TB]
        d = jnp.sum(e, axis=0, keepdims=True)                     # [1, TB]
        # approx reciprocal -> EUP; row sums exact only to ~1e-3 (fine for argmax).
        parts.append(e * pl.reciprocal(d, approx=True))
    out_ref[...] = jnp.concatenate(parts, axis=0)                 # [12, TB]


def sentence_category_classifier_head(last_hidden_state, w, b, *,
                                      tile_b=2048, approx_gelu=True):
    """last_hidden_state: [B, S, 256] (bf16 or f32);
    w: fused head weight [12, 256] (torch Linear [out, in] layout, heads
       concatenated along out in order category/sentiment/tense/certainty);
    b: fused bias [12].

    Returns (category [B,4], sentiment [B,3], tense [B,3], certainty [B,2]), f32.
    """
    B, S, H = last_hidden_state.shape
    assert H == HIDDEN
    # CLS pooling in the wrapper: contiguous [B, 256] read, fused by XLA into
    # the encoder epilogue; kernel sees a dense 2D block (no sublane padding).
    cls = last_hidden_state[:, 0, :]
    w_k = jnp.asarray(w, dtype=jnp.bfloat16)                       # MXU-native
    b_k = jnp.asarray(b, dtype=jnp.float32).reshape(TOTAL_OUT, 1)

    tb = _choose_tile(B, tile_b)
    grid = (pl.cdiv(B, tb),)

    act_bytes = cls.dtype.itemsize
    cost = pl.CostEstimate(
        flops=2 * B * HIDDEN * TOTAL_OUT,
        transcendentals=B * (HIDDEN + TOTAL_OUT),                  # gelu + exp
        bytes_accessed=(B * HIDDEN * act_bytes
                        + TOTAL_OUT * HIDDEN * 2
                        + B * TOTAL_OUT * 4))

    kernel = functools.partial(_classifier_head_kernel, approx_gelu=approx_gelu)

    fused = pl.pallas_call(
        kernel,
        out_shape=jax.ShapeDtypeStruct((TOTAL_OUT, B), jnp.float32),
        grid=grid,
        in_specs=[
            pl.BlockSpec((tb, HIDDEN), lambda i: (i, 0)),          # CLS activations
            pl.BlockSpec((TOTAL_OUT, HIDDEN), lambda i: (0, 0)),   # resident weights
            pl.BlockSpec((TOTAL_OUT, 1), lambda i: (0, 0)),        # resident bias
        ],
        # Lane-dense output slab: batch on the lane axis, unmasked stores.
        out_specs=pl.BlockSpec((TOTAL_OUT, tb), lambda i: (0, i)),
        compiler_params=pltpu.CompilerParams(
            dimension_semantics=("parallel",)),                    # v7x dual-TC sharding
        cost_estimate=cost,
    )(cls, w_k, b_k)                                               # fused: [12, B]

    c0 = HEAD_SIZES[0]
    c1 = c0 + HEAD_SIZES[1]
    c2 = c1 + HEAD_SIZES[2]
    return (fused[:c0].T, fused[c0:c1].T, fused[c1:c2].T, fused[c2:].T)


if __name__ == "__main__":
    key = jax.random.PRNGKey(0)
    B, S, V = 2, 8, 64
    k_ids, k_emb, k_w, k_b = jax.random.split(key, 4)

    # Synthetic, deterministic stand-in for AutoModel output (base encoder itself
    # is not translatable): toy embedding lookup producing last_hidden_state in
    # bf16 so the kernel's HBM read is half-width.
    input_ids = jax.random.randint(k_ids, (B, S), 0, V)
    attention_mask = jnp.ones((B, S), jnp.int32)
    emb_table = jax.random.normal(k_emb, (V, HIDDEN), jnp.float32) * 0.5
    last_hidden_state = (emb_table[input_ids]
                         * attention_mask[..., None].astype(jnp.float32)
                         ).astype(jnp.bfloat16)

    # Fused 4-head parameters in torch Linear layout: weight [out=12, in=256].
    w = jax.random.normal(k_w, (TOTAL_OUT, HIDDEN), jnp.float32) * 0.05
    b = jax.random.normal(k_b, (TOTAL_OUT,), jnp.float32) * 0.01

    outs = sentence_category_classifier_head(last_hidden_state, w, b)
    outs = jax.block_until_ready(outs)

    assert tuple(o.shape for o in outs) == ((B, 4), (B, 3), (B, 3), (B, 2))

    # Pure-JAX reference (exact erf GELU, f32 matmul, exact softmax); loose
    # tolerance covers bf16 MXU + tanh-GELU + approx-reciprocal deltas.
    x_ref = last_hidden_state[:, 0, :].astype(jnp.float32)
    g_ref = 0.5 * x_ref * (1.0 + lax.erf(x_ref / math.sqrt(2.0)))
    logits_ref = g_ref @ w.T + b
    refs = [jax.nn.softmax(logits_ref[:, s:s + n], axis=-1)
            for s, n in zip(HEAD_STARTS, HEAD_SIZES)]
    for o, r in zip(outs, refs):
        assert bool(jnp.allclose(o, r, atol=2e-2))
        assert bool(jnp.allclose(jnp.sum(o, axis=-1), 1.0, atol=5e-3))
    print("KERNEL_OK")
</pallas_src>

<mosaic_0001>
module attributes {stable_mosaic.version = 11 : i64} {
  func.func @_classifier_head_kernel(%arg0: i32, %arg1: memref<2x256xbf16, #tpu.memory_space<vmem>>, %arg2: memref<12x256xbf16, #tpu.memory_space<vmem>>, %arg3: memref<12x1xf32, #tpu.memory_space<vmem>>, %arg4: memref<12x2xf32, #tpu.memory_space<vmem>>) attributes {dimension_semantics = [#tpu.dimension_semantics<parallel>], iteration_bounds = array<i64: 1>, scalar_prefetch = 0 : i64, scratch_operands = 0 : i64, tpu.core_type = #tpu.core_type<tc>, window_params = [{transform_indices = @transform_0, window_bounds = array<i64: 2, 256>}, {pipeline_mode = #tpu.pipeline_mode<synchronous>, transform_indices = @transform_1, window_bounds = array<i64: 12, 256>}, {pipeline_mode = #tpu.pipeline_mode<synchronous>, transform_indices = @transform_2, window_bounds = array<i64: 12, 1>}, {transform_indices = @transform_3, window_bounds = array<i64: 12, 2>}]} {
    %c0 = arith.constant 0 : index
    %c0_0 = arith.constant 0 : index
    %0 = vector.load %arg1[%c0, %c0_0] : memref<2x256xbf16, #tpu.memory_space<vmem>>, vector<2x256xbf16>
    %1 = arith.mulf %0, %0 : vector<2x256xbf16>
    %2 = arith.mulf %0, %1 : vector<2x256xbf16>
    %cst = arith.constant 4.467770e-02 : bf16
    %3 = vector.broadcast %cst : bf16 to vector<2x256xbf16>
    %4 = arith.mulf %3, %2 : vector<2x256xbf16>
    %5 = arith.addf %0, %4 : vector<2x256xbf16>
    %cst_1 = arith.constant 7.968750e-01 : bf16
    %6 = vector.broadcast %cst_1 : bf16 to vector<2x256xbf16>
    %7 = arith.mulf %6, %5 : vector<2x256xbf16>
    %8 = math.tanh %7 : vector<2x256xbf16>
    %cst_2 = arith.constant 1.000000e+00 : bf16
    %9 = vector.broadcast %cst_2 : bf16 to vector<2x256xbf16>
    %10 = arith.addf %9, %8 : vector<2x256xbf16>
    %cst_3 = arith.constant 5.000000e-01 : bf16
    %11 = vector.broadcast %cst_3 : bf16 to vector<2x256xbf16>
    %12 = arith.mulf %11, %10 : vector<2x256xbf16>
    %13 = arith.mulf %0, %12 : vector<2x256xbf16>
    %c0_4 = arith.constant 0 : index
    %c0_5 = arith.constant 0 : index
    %14 = vector.load %arg2[%c0_4, %c0_5] : memref<12x256xbf16, #tpu.memory_space<vmem>>, vector<12x256xbf16>
    %cst_6 = arith.constant dense<0.000000e+00> : vector<12x2xf32>
    %15 = tpu.matmul %14, %13, %cst_6 {dimension_numbers = #tpu.dot_dimension_numbers<[1], [1], [0], [0], [0, 0, 1, 0], [], []>} : vector<12x256xbf16>, vector<2x256xbf16>, vector<12x2xf32> -> vector<12x2xf32>
    %c0_7 = arith.constant 0 : index
    %c0_8 = arith.constant 0 : index
    %16 = vector.load %arg3[%c0_7, %c0_8] : memref<12x1xf32, #tpu.memory_space<vmem>>, vector<12x1xf32>
    %17 = vector.broadcast %16 : vector<12x1xf32> to vector<12x2xf32>
    %18 = arith.addf %15, %17 : vector<12x2xf32>
    %19 = vector.extract_strided_slice %18 {offsets = [0, 0], sizes = [4, 2], strides = [1, 1]} : vector<12x2xf32> to vector<4x2xf32>
    %cst_9 = arith.constant dense<0xFF800000> : vector<2xf32>
    %20 = vector.multi_reduction <maximumf>, %19, %cst_9 [0] : vector<4x2xf32> to vector<2xf32>
    %21 = vector.shape_cast %20 : vector<2xf32> to vector<1x2xf32>
    %22 = vector.broadcast %21 : vector<1x2xf32> to vector<4x2xf32>
    %23 = arith.subf %19, %22 : vector<4x2xf32>
    %24 = math.exp %23 : vector<4x2xf32>
    %cst_10 = arith.constant dense<0.000000e+00> : vector<2xf32>
    %25 = vector.multi_reduction <add>, %24, %cst_10 [0] : vector<4x2xf32> to vector<2xf32>
    %26 = vector.shape_cast %25 : vector<2xf32> to vector<1x2xf32>
    %27 = tpu.reciprocal %26 {approx = true} : vector<1x2xf32> -> vector<1x2xf32>
    %28 = vector.broadcast %27 : vector<1x2xf32> to vector<4x2xf32>
    %29 = arith.mulf %24, %28 : vector<4x2xf32>
    %30 = vector.extract_strided_slice %18 {offsets = [4, 0], sizes = [3, 2], strides = [1, 1]} : vector<12x2xf32> to vector<3x2xf32>
    %cst_11 = arith.constant dense<0xFF800000> : vector<2xf32>
    %31 = vector.multi_reduction <maximumf>, %30, %cst_11 [0] : vector<3x2xf32> to vector<2xf32>
    %32 = vector.shape_cast %31 : vector<2xf32> to vector<1x2xf32>
    %33 = vector.broadcast %32 : vector<1x2xf32> to vector<3x2xf32>
    %34 = arith.subf %30, %33 : vector<3x2xf32>
    %35 = math.exp %34 : vector<3x2xf32>
    %cst_12 = arith.constant dense<0.000000e+00> : vector<2xf32>
    %36 = vector.multi_reduction <add>, %35, %cst_12 [0] : vector<3x2xf32> to vector<2xf32>
    %37 = vector.shape_cast %36 : vector<2xf32> to vector<1x2xf32>
    %38 = tpu.reciprocal %37 {approx = true} : vector<1x2xf32> -> vector<1x2xf32>
    %39 = vector.broadcast %38 : vector<1x2xf32> to vector<3x2xf32>
    %40 = arith.mulf %35, %39 : vector<3x2xf32>
    %41 = vector.extract_strided_slice %18 {offsets = [7, 0], sizes = [3, 2], strides = [1, 1]} : vector<12x2xf32> to vector<3x2xf32>
    %cst_13 = arith.constant dense<0xFF800000> : vector<2xf32>
    %42 = vector.multi_reduction <maximumf>, %41, %cst_13 [0] : vector<3x2xf32> to vector<2xf32>
    %43 = vector.shape_cast %42 : vector<2xf32> to vector<1x2xf32>
    %44 = vector.broadcast %43 : vector<1x2xf32> to vector<3x2xf32>
    %45 = arith.subf %41, %44 : vector<3x2xf32>
    %46 = math.exp %45 : vector<3x2xf32>
    %cst_14 = arith.constant dense<0.000000e+00> : vector<2xf32>
    %47 = vector.multi_reduction <add>, %46, %cst_14 [0] : vector<3x2xf32> to vector<2xf32>
    %48 = vector.shape_cast %47 : vector<2xf32> to vector<1x2xf32>
    %49 = tpu.reciprocal %48 {approx = true} : vector<1x2xf32> -> vector<1x2xf32>
    %50 = vector.broadcast %49 : vector<1x2xf32> to vector<3x2xf32>
    %51 = arith.mulf %46, %50 : vector<3x2xf32>
    %52 = vector.extract_strided_slice %18 {offsets = [10, 0], sizes = [2, 2], strides = [1, 1]} : vector<12x2xf32> to vector<2x2xf32>
    %cst_15 = arith.constant dense<0xFF800000> : vector<2xf32>
    %53 = vector.multi_reduction <maximumf>, %52, %cst_15 [0] : vector<2x2xf32> to vector<2xf32>
    %54 = vector.shape_cast %53 : vector<2xf32> to vector<1x2xf32>
    %55 = vector.broadcast %54 : vector<1x2xf32> to vector<2x2xf32>
    %56 = arith.subf %52, %55 : vector<2x2xf32>
    %57 = math.exp %56 : vector<2x2xf32>
    %cst_16 = arith.constant dense<0.000000e+00> : vector<2xf32>
    %58 = vector.multi_reduction <add>, %57, %cst_16 [0] : vector<2x2xf32> to vector<2xf32>
    %59 = vector.shape_cast %58 : vector<2xf32> to vector<1x2xf32>
    %60 = tpu.reciprocal %59 {approx = true} : vector<1x2xf32> -> vector<1x2xf32>
    %61 = vector.broadcast %60 : vector<1x2xf32> to vector<2x2xf32>
    %62 = arith.mulf %57, %61 : vector<2x2xf32>
    %63 = tpu.concatenate %29, %40, %51, %62 in 0 : vector<4x2xf32>, vector<3x2xf32>, vector<3x2xf32>, vector<2x2xf32> -> vector<12x2xf32>
    %c0_17 = arith.constant 0 : index
    %c0_18 = arith.constant 0 : index
    %64 = vector.load %arg4[%c0_17, %c0_18] : memref<12x2xf32, #tpu.memory_space<vmem>>, vector<12x2xf32>
    tpu.vector_store %arg4[%c0_17, %c0_18], %63 {strides = array<i32>} : memref<12x2xf32, #tpu.memory_space<vmem>>, vector<12x2xf32>,
    return
  }
  func.func @transform_0(%arg0: i32) -> (i32, i32) {
    %c0_i32 = arith.constant 0 : i32
    %c0_i32_0 = arith.constant 0 : i32
    return %arg0, %c0_i32 : i32, i32
  }
  func.func @transform_1(%arg0: i32) -> (i32, i32) {
    %c0_i32 = arith.constant 0 : i32
    %c0_i32_0 = arith.constant 0 : i32
    %c0_i32_1 = arith.constant 0 : i32
    return %c0_i32, %c0_i32_0 : i32, i32
  }
  func.func @transform_2(%arg0: i32) -> (i32, i32) {
    %c0_i32 = arith.constant 0 : i32
    %c0_i32_0 = arith.constant 0 : i32
    %c0_i32_1 = arith.constant 0 : i32
    return %c0_i32, %c0_i32_0 : i32, i32
  }
  func.func @transform_3(%arg0: i32) -> (i32, i32) {
    %c0_i32 = arith.constant 0 : i32
    %c0_i32_0 = arith.constant 0 : i32
    return %c0_i32, %arg0 : i32, i32
  }
}

</mosaic_0001>

<llo_original>
// kernel: tpu_custom_call.1
$region0: #{tpu_custom_call.1}
  #allocation0 [shape = 'u32[]', space=smem, size = 0x4, offset = 0x4, fixed_abs, tag = 'smem constant byte address 0x4 - core index']
  #allocation1 [shape = 'u32[72,128]{1,0:T(1,128)}', space=vmem, size = 0x9000, scoped, tag = 'internal scratch']
  %s0 = inlined_call_operand.hbm [shape: bf16[2,256], index: 0, kind: input, shape index: {}]
  %s1 = inlined_call_operand.vmem [shape: bf16[12,256], index: 1, kind: input, shape index: {}]
  %s2 = inlined_call_operand.vmem [shape: f32[12,1], index: 2, kind: input, shape index: {}]
  %s3 = inlined_call_operand.vmem [shape: f32[12,2], index: 3, kind: output, shape index: {}]
  %s4 = sld [smem:[#allocation0]]
  $region26: #{tpu_custom_call.1} parent=0
    _
  %s6 = ssub.s32 1, %s4
  %s7 = scalar_select 0, %s6, %s4
  $region1: #{tpu_custom_call.1} parent=0
    #allocation2 [shape = 'u8[1024]{0}', space=vmem, size = 0x400, scoped, tag = 'input window, operand 0, single buffered']
    #allocation3 [shape = 's32[1]{0}', space=sflag, size = 0x4, scoped, tag = 'scoped memory for tpu_custom_call.1']
    %8 = vsyncpa [#allocation3], 0
    // Predicated region
    $region2: #{tpu_custom_call.1} parent=1 // pred_check
      _
    $region3: #{tpu_custom_call.1} parent=1 // pred_check_branch
      %10 = sbr.rel (0) target = $region5
    $region4: #{tpu_custom_call.1} parent=1 // pred_region
      %12 = vsyncadd [#allocation3], 0
      %s14 = sshll.u32 %s0, 4
      %s15 = int_to_ptr.hbm [resolvable:$true] %s14
      %s16 = sshll.u32 [#allocation2], 4
      %s17 = int_to_ptr.vmem [resolvable:$true] %s16
      %19 = dma.hbm_to_vmem [thread:$0]  %s15, 32, %s17, [#allocation3]
    $region5: #{tpu_custom_call.1} parent=1 // pred_fallthru
      _
    // Predicated region
    $region6: #{tpu_custom_call.1} parent=1 // pred_check
      _
    $region7: #{tpu_custom_call.1} parent=1 // pred_check_branch
      %21 = sbr.rel (0) target = $region9
    $region8: #{tpu_custom_call.1} parent=1 // pred_region
      _
    $region9: #{tpu_custom_call.1} parent=1 // pred_fallthru
      _
    // Predicated region
    $region10: #{tpu_custom_call.1} parent=1 // pred_check
      _
    $region11: #{tpu_custom_call.1} parent=1 // pred_check_branch
      %23 = sbr.rel (0) target = $region13
    $region12: #{tpu_custom_call.1} parent=1 // pred_region
      _
    $region13: #{tpu_custom_call.1} parent=1 // pred_fallthru
      _
    // Predicated region
    $region14: #{tpu_custom_call.1} parent=1 // pred_check
      _
    $region15: #{tpu_custom_call.1} parent=1 // pred_check_branch
      %25 = sbr.rel (0) target = $region17
    $region16: #{tpu_custom_call.1} parent=1 // pred_region
      %27 = dma.done [#allocation3], 32
    $region17: #{tpu_custom_call.1} parent=1 // pred_fallthru
      _
    %v29 = vld [vmem:[#allocation2] sm:$0x3]
    %v30 = vunpack.c.l.bf16 %v29
    %v31 = vmul.f32 %v30, %v30
    %33 = vst [vmem:[#allocation1] ss:$4 sm:$0xff] %v31
    %v34 = vld.sshfl [vmem:[#allocation1] sm:$0xff pattern:$0x73625140]
    %v35 = vld.sshfl [vmem:[#allocation1 + $0x8] sm:$0xff pattern:$0x73625140]
    %v38 = vpack.c.bf16 %v35, %v34
    %v39 = vunpack.c.l.bf16 %v38
    %v40 = vunpack.c.h.bf16 %v38
    %v43 = vrot.slane %v40, 6
    %vm44 = vcmask 1041408
    %v45 = vsel %vm44, %v39, %v43
    %v47 = vmul.f32 %v30, %v45
    %49 = vst [vmem:[#allocation1] ss:$4 sm:$0xff] %v47
    %v50 = vld.sshfl [vmem:[#allocation1] sm:$0xff pattern:$0x73625140]
    %v51 = vld.sshfl [vmem:[#allocation1 + $0x8] sm:$0xff pattern:$0x73625140]
    %v54 = vpack.c.bf16 %v51, %v50
    %v55 = vunpack.c.l.bf16 %v54
    %v56 = vunpack.c.h.bf16 %v54
    %v57 = vmul.f32 %v55, 0.044677734
    %v58 = vmul.f32 %v56, 0.044677734
    %v59 = vpack.c.bf16 %v58, %v57
    %v60 = vunpack.c.l.bf16 %v59
    %v61 = vunpack.c.h.bf16 %v59
    %v64 = vrot.slane %v61, 6
    %v65 = vsel %vm44, %v60, %v64
    %v67 = vadd.f32 %v30, %v65
    %69 = vst [vmem:[#allocation1] ss:$4 sm:$0xff] %v67
    %v70 = vld.sshfl [vmem:[#allocation1] sm:$0xff pattern:$0x73625140]
    %v71 = vld.sshfl [vmem:[#allocation1 + $0x8] sm:$0xff pattern:$0x73625140]
    %v74 = vpack.c.bf16 %v71, %v70
    %v75 = vunpack.c.l.bf16 %v74
    %v76 = vunpack.c.h.bf16 %v74
    %v77 = vmul.f32 %v75, 0.796875
    %v78 = vmul.f32 %v76, 0.796875
    %v79 = vpack.c.bf16 %v78, %v77
    %v80 = vunpack.c.l.bf16 %v79
    %v81 = vunpack.c.h.bf16 %v79
    %v82 = vtanh.pop %v80
    %v83 = vtanh.pop %v81
    %v84 = vpack.c.bf16 %v83, %v82
    %v85 = vunpack.c.l.bf16 %v84
    %v86 = vunpack.c.h.bf16 %v84
    %v87 = vadd.f32 %v85, 1.0
    %v88 = vadd.f32 %v86, 1.0
    %v89 = vpack.c.bf16 %v88, %v87
    %v90 = vunpack.c.l.bf16 %v89
    %v91 = vunpack.c.h.bf16 %v89
    %v92 = vmul.f32 %v90, 0.5
    %v93 = vmul.f32 %v91, 0.5
    %v94 = vpack.c.bf16 %v93, %v92
    %v95 = vunpack.c.l.bf16 %v94
    %v96 = vunpack.c.h.bf16 %v94
    %v99 = vrot.slane %v96, 6
    %v100 = vsel %vm44, %v95, %v99
    %v102 = vmul.f32 %v30, %v100
    %104 = vst [vmem:[#allocation1] ss:$4 sm:$0xff] %v102
    %v105 = vld.sshfl [vmem:[#allocation1] sm:$0xff pattern:$0x73625140]
    %v106 = vld.sshfl [vmem:[#allocation1 + $0x8] sm:$0xff pattern:$0x73625140]
    %v109 = vpack.c.bf16 %v105, %v105
    %v110 = vpack.c.bf16 %v106, %v106
    %v111 = vld [vmem:[%s1] sm:$0xff]
    %v112 = vld [vmem:[%s1 + $0x8] sm:$0x33]
    %v113 = vld [vmem:[%s2] sm:$0xff]
    %v114 = vld [vmem:[%s2 + $0x8] sm:$0xf]
    %116 = vset.pattern.permute.xlu0 0
    %117 = vperm.xlu0 %116, %v113
    %v118 = vpop.permute.xlu0 %117
    %121 = vset.pattern.permute.xlu0 0
    %122 = vperm.xlu0 %121, %v114
    %v123 = vpop.permute.xlu0 %122
    %v127 = vunpack.c.l.b16 %v111
    %v128 = vunpack.c.h.b16 %v111
    %v129 = vunpack.c.l.b16 %v112
    %v130 = vunpack.c.h.b16 %v112
    %v131 = vpack.c.b16 %v129, %v127
    %v132 = vpack.c.b16 %v130, %v128
    %135 = vmatpush.bf16.xpose.msra.mxu0 0
    %136 = vmatpush.bf16.xpose.msra.mxu0 0
    %137 = vmatpush.bf16.xpose.msra.mxu0 0
    %138 = vmatpush.bf16.xpose.msra.mxu0 0
    %139 = vmatpush.bf16.xpose.msra.mxu0 0
    %140 = vmatpush.bf16.xpose.msra.mxu0 0
    %141 = vmatpush.bf16.xpose.msra.mxu0 0
    %142 = vmatpush.bf16.xpose.msra.mxu0 %v109
    %143 = vmatmul.bf16.gmra.mxu0 %v131
    %v144 = vpop.f32.mrf.mxu0
    %v145 = vadd.f32 %v118, %v144
    %v146 = vpop.f32.mrf.mxu0
    %v147 = vadd.f32 %v123, %v146
    %148 = vdwg.mxu0
    %149 = vmatpush.bf16.xpose.msra.mxu0 0
    %150 = vmatpush.bf16.xpose.msra.mxu0 0
    %151 = vmatpush.bf16.xpose.msra.mxu0 0
    %152 = vmatpush.bf16.xpose.msra.mxu0 0
    %153 = vmatpush.bf16.xpose.msra.mxu0 0
    %154 = vmatpush.bf16.xpose.msra.mxu0 0
    %155 = vmatpush.bf16.xpose.msra.mxu0 0
    %156 = vmatpush.bf16.xpose.msra.mxu0 %v110
    %157 = vmatmul.bf16.gmra.mxu0 %v132
    %v158 = vpop.f32.mrf.mxu0
    %v159 = vadd.f32 %v145, %v158
    %v160 = vpop.f32.mrf.mxu0
    %v161 = vadd.f32 %v147, %v160
    %162 = vdwg.mxu0
    %vm163 = vcmask 11264
    %v164 = vsel %vm163, %v159, -inf
    %v165 = vrot.slane %v164, 4
    %v166 = vmax.f32 %v164, %v165
    %v167 = vrot.slane %v166, 2
    %v168 = vmax.f32 %v166, %v167
    %v169 = vrot.slane %v168, 1
    %v170 = vmax.f32 %v168, %v169
    %v171 = vsub.f32 %v159, %v170
    %v172 = vmul.f32 %v171, 1.442695
    %v173 = vpow.pop %v172
    %v174 = vsel %vm163, %v173, 0.0
    %v175 = vrot.slane %v174, 4
    %v176 = vadd.f32 %v174, %v175
    %v177 = vrot.slane %v176, 2
    %v178 = vadd.f32 %v176, %v177
    %v179 = vrot.slane %v178, 1
    %v180 = vadd.f32 %v178, %v179
    %v181 = vrcp.pop %v180
    %v182 = vmul.f32 %v173, %v181
    %vm183 = vcmask 14340
    %v184 = vsel %vm183, %v159, -inf
    %v185 = vrot.slane %v184, 4
    %v186 = vmax.f32 %v184, %v185
    %v187 = vrot.slane %v186, 2
    %v188 = vmax.f32 %v186, %v187
    %v189 = vrot.slane %v188, 1
    %v190 = vmax.f32 %v188, %v189
    %v191 = vsub.f32 %v159, %v190
    %v192 = vmul.f32 %v191, 1.442695
    %v193 = vpow.pop %v192
    %v195 = vrot.slane %v193, 4
    %vm197 = vcmask 10240
    %v198 = vsel %vm197, %v195, 0.0
    %v199 = vrot.slane %v198, 4
    %v200 = vadd.f32 %v198, %v199
    %v201 = vrot.slane %v200, 2
    %v202 = vadd.f32 %v200, %v201
    %v203 = vrot.slane %v202, 1
    %v204 = vadd.f32 %v202, %v203
    %v205 = vrcp.pop %v204
    %v206 = vmul.f32 %v193, %v205
    %vm207 = vcmask 15367
    %v208 = vsel %vm207, %v159, -inf
    %vm209 = vcmask 9216
    %v210 = vsel %vm209, %v161, -inf
    %v211 = vmax.f32 %v208, %v210
    %v212 = vrot.slane %v211, 4
    %v213 = vmax.f32 %v211, %v212
    %v214 = vrot.slane %v213, 2
    %v215 = vmax.f32 %v213, %v214
    %v216 = vrot.slane %v215, 1
    %v217 = vmax.f32 %v215, %v216
    %v218 = vsub.f32 %v159, %v217
    %v219 = vsub.f32 %v161, %v217
    %v220 = vmul.f32 %v218, 1.442695
    %v221 = vpow.pop %v220
    %v222 = vmul.f32 %v219, 1.442695
    %v223 = vpow.pop %v222
    %vm226 = vcmask 1040384
    %v227 = vrot.slane %v221, 7
    %v228 = vrot.slane %v223, 7
    %v229 = vsel %vm226, %v227, %v228
    %v231 = vsel %vm197, %v229, 0.0
    %v232 = vrot.slane %v231, 4
    %v233 = vadd.f32 %v231, %v232
    %v234 = vrot.slane %v233, 2
    %v235 = vadd.f32 %v233, %v234
    %v236 = vrot.slane %v235, 1
    %v237 = vadd.f32 %v235, %v236
    %v238 = vrcp.pop %v237
    %v239 = vmul.f32 %v221, %v238
    %v240 = vmul.f32 %v223, %v238
    %vm241 = vcmask 11266
    %v242 = vsel %vm241, %v161, -inf
    %v243 = vrot.slane %v242, 4
    %v244 = vmax.f32 %v242, %v243
    %v245 = vrot.slane %v244, 2
    %v246 = vmax.f32 %v244, %v245
    %v247 = vrot.slane %v246, 1
    %v248 = vmax.f32 %v246, %v247
    %v249 = vsub.f32 %v161, %v248
    %v250 = vmul.f32 %v249, 1.442695
    %v251 = vpow.pop %v250
    %v253 = vrot.slane %v251, 2
    %v255 = vsel %vm209, %v253, 0.0
    %v256 = vrot.slane %v255, 4
    %v257 = vadd.f32 %v255, %v256
    %v258 = vrot.slane %v257, 2
    %v259 = vadd.f32 %v257, %v258
    %v260 = vrot.slane %v259, 1
    %v261 = vadd.f32 %v259, %v260
    %v262 = vrcp.pop %v261
    %v263 = vmul.f32 %v251, %v262
    %vm264 = vcmask 1043456
    %v265 = vsel %vm264, %v182, %v206
    %vm266 = vcmask 1046528
    %v267 = vsel %vm266, %v265, %v239
    %v268 = vsel %vm44, %v240, %v263
    %vm269 = vcmask 15360
    %270 = vst.msk [vmem:[%s3] sm:$0xff] %vm269, %v267
    %271 = vst.msk [vmem:[%s3 + $0x8] sm:$0xf] %vm163, %v268
    // Predicated region
    $region18: #{tpu_custom_call.1} parent=1 // pred_check
      _
    $region19: #{tpu_custom_call.1} parent=1 // pred_check_branch
      %273 = sbr.rel (0) target = $region21
    $region20: #{tpu_custom_call.1} parent=1 // pred_region
      _
    $region21: #{tpu_custom_call.1} parent=1 // pred_fallthru
      _
    // Predicated region
    $region22: #{tpu_custom_call.1} parent=1 // pred_check
      _
    $region23: #{tpu_custom_call.1} parent=1 // pred_check_branch
      %275 = sbr.rel (0) target = $region25
    $region24: #{tpu_custom_call.1} parent=1 // pred_region
      _
    $region25: #{tpu_custom_call.1} parent=1 // pred_fallthru
      _
    %276 = vsyncpa [#allocation3], 1

</llo_original>
